<compile_context>
chip_gen: v5e
topology: v5e:2x2
jax: 0.10.0
libtpu: 0.0.40
codegen_flags: <defaults>
</compile_context>

<pallas_src>
import jax
import jax.numpy as jnp
from jax.experimental import pallas as pl
from jax.experimental.pallas import tpu as pltpu

_LANE = 128   # vreg lane width; the batch dimension rides the lane axis here.


def _round_up(x, m):
    return ((x + m - 1) // m) * m


def _leaky_relu(x, slope=0.1):
    # max(x, slope*x) == LeakyReLU(slope) for 0 < slope < 1.
    return jnp.maximum(x, slope * x)


def _choose_batch_tiling(B, batch_tile):
    """Balanced batch tiles, each a multiple of 128 lanes, minimal padding.

    Returns (b_pad, tile, num_tiles) with num_tiles * tile == b_pad >= B.
    At least 2 grid steps for B >= 256 (4 for B >= 4096) so the "parallel"
    batch axis actually spans both v7x TensorCores and still pipelines.
    """
    batch_tile = max(_LANE, _round_up(int(batch_tile), _LANE))
    if B >= 4096:
        min_steps = 4
    elif B >= 256:
        min_steps = 2
    else:
        min_steps = 1
    steps = max(pl.cdiv(B, batch_tile), min_steps)
    tile = _round_up(pl.cdiv(B, steps), _LANE)
    steps = pl.cdiv(B, tile)          # rounding the tile up may drop a step
    return steps * tile, tile, steps


def proprio_encoder_kernel(x_ref,
                           w1_ref, b1_ref,
                           w2_ref, b2_ref,
                           w3_ref, b3_ref,
                           w4_ref, b4_ref,
                           o_ref):
    """Fused 4x (matmul + bias + LeakyReLU(0.1)) on one feature-major batch tile.

    Activations are (features, TB): features on sublanes, batch on lanes, so
    all intermediates and the output store are lane-dense.  Weights arrive in
    bf16, nn.Linear (out, in) layout; alpha is pre-folded into w1 by the
    wrapper.  Dots accumulate in f32; biases are f32 (out, 1) columns.
    """
    h = x_ref[...]                                             # (8, TB) bf16
    h = _leaky_relu(jnp.dot(w1_ref[...], h,
                            preferred_element_type=jnp.float32) + b1_ref[...])
    h = _leaky_relu(jnp.dot(w2_ref[...], h.astype(jnp.bfloat16),
                            preferred_element_type=jnp.float32) + b2_ref[...])
    h = _leaky_relu(jnp.dot(w3_ref[...], h.astype(jnp.bfloat16),
                            preferred_element_type=jnp.float32) + b3_ref[...])
    h = _leaky_relu(jnp.dot(w4_ref[...], h.astype(jnp.bfloat16),
                            preferred_element_type=jnp.float32) + b4_ref[...])
    o_ref[...] = h.astype(o_ref.dtype)                         # (2*z_dim, TB)


def proprio_encoder(proprio, params, alpha, batch_tile=2048,
                    transposed_output=False):
    """Run the ProprioEncoder forward pass.

    Args:
      proprio: (B, 8) float32 input.
      params: dict with PyTorch-layout weights w1..w4 of shape (out, in) and
        biases b1..b4 of shape (out,)  (exactly nn.Linear's storage).
      alpha: scalar input scale (folded into w1; the pallas_call does not
        recompile per alpha value).
      batch_tile: max rows per grid step (rounded to a multiple of 128).
      transposed_output: if True, return the kernel-native (2*z_dim, B) layout
        and skip the wrapper transpose.

    Returns:
      (B, 2*z_dim) float32 output (or (2*z_dim, B) if transposed_output).
    """
    B, in_dim = proprio.shape
    out_dim = params["w4"].shape[0]    # 2 * z_dim

    # nn.Linear (out, in) is exactly the feature-major LHS -> no transpose.
    # Fold alpha into w1: (alpha*x) @ W^T == x @ (alpha*W)^T.  bf16 weights,
    # f32 biases as (out, 1) columns (broadcast along the lane/batch axis).
    w1 = (params["w1"].astype(jnp.float32) * jnp.float32(alpha)).astype(jnp.bfloat16)
    w2 = params["w2"].astype(jnp.bfloat16)
    w3 = params["w3"].astype(jnp.bfloat16)
    w4 = params["w4"].astype(jnp.bfloat16)
    b1, b2, b3, b4 = (params[f"b{i}"].reshape(-1, 1).astype(jnp.float32)
                      for i in range(1, 5))

    b_pad, tile, num_tiles = _choose_batch_tiling(B, batch_tile)

    # (B, 8) -> (8, b_pad) bf16.  8-row transpose is trivial; pad cols are 0
    # and their (nonzero, bias-derived) outputs are sliced off below.
    x_t = proprio.T.astype(jnp.bfloat16)
    if b_pad != B:
        x_t = jnp.pad(x_t, ((0, 0), (0, b_pad - B)))

    def const_map(i):      # weights / biases: DMA'd once, VMEM-resident
        return (0, 0)

    def batch_map(i):      # input / output: walk the batch along the lane axis
        return (0, i)

    in_specs = [
        pl.BlockSpec((in_dim, tile), batch_map),
        pl.BlockSpec(w1.shape, const_map), pl.BlockSpec(b1.shape, const_map),
        pl.BlockSpec(w2.shape, const_map), pl.BlockSpec(b2.shape, const_map),
        pl.BlockSpec(w3.shape, const_map), pl.BlockSpec(b3.shape, const_map),
        pl.BlockSpec(w4.shape, const_map), pl.BlockSpec(b4.shape, const_map),
    ]
    out_spec = pl.BlockSpec((out_dim, tile), batch_map)

    # Advisory cost estimate for XLA's scheduler.
    flops = 2 * b_pad * (8 * 32 + 32 * 64 + 64 * 128 + 128 * out_dim)
    param_bytes = (sum(int(w.size) * 2 for w in (w1, w2, w3, w4)) +
                   sum(int(b.size) * 4 for b in (b1, b2, b3, b4)))
    bytes_accessed = b_pad * in_dim * 2 + b_pad * out_dim * 4 + param_bytes

    out_t = pl.pallas_call(
        proprio_encoder_kernel,
        out_shape=jax.ShapeDtypeStruct((out_dim, b_pad), jnp.float32),
        grid=(num_tiles,),
        in_specs=in_specs,
        out_specs=out_spec,
        compiler_params=pltpu.CompilerParams(
            dimension_semantics=("parallel",)),
        cost_estimate=pl.CostEstimate(
            flops=flops, transcendentals=0, bytes_accessed=bytes_accessed),
    )(x_t, w1, b1, w2, b2, w3, b3, w4, b4)

    out_t = out_t[:, :B]
    if transposed_output:
        return out_t
    return out_t.T      # back to the module's (B, 2*z_dim) contract


def init_params(key, z_dim):
    """Deterministic synthetic parameters in nn.Linear layout ((out,in), (out,))."""
    dims = [8, 32, 64, 128, 2 * z_dim]
    params = {}
    for i, (din, dout) in enumerate(zip(dims[:-1], dims[1:]), start=1):
        key, kw, kb = jax.random.split(key, 3)
        scale = jnp.sqrt(2.0 / din)
        params[f"w{i}"] = jax.random.normal(kw, (dout, din), jnp.float32) * scale
        params[f"b{i}"] = jax.random.normal(kb, (dout,), jnp.float32) * 0.01
    return params


def reference_forward(proprio, params, alpha):
    """Plain-JAX f32 reference mirroring the PyTorch module."""
    h = proprio * alpha
    for i in range(1, 5):
        h = h @ params[f"w{i}"].T + params[f"b{i}"]
        h = jnp.where(h > 0, h, 0.1 * h)
    # unsqueeze(2)[:, :, 0] is a shape no-op
    return h


def _assert_close(out, ref, rel=4e-2, tag=""):
    """Scale-aware check (bf16 weights/activations vs the f32 reference)."""
    scale = float(jnp.maximum(jnp.max(jnp.abs(ref)), 1.0))
    err = float(jnp.max(jnp.abs(out - ref)))
    assert err <= rel * scale, f"{tag}: max err {err} > {rel} * scale {scale}"


if __name__ == "__main__":
    z_dim = 32
    alpha = 2.0

    key = jax.random.PRNGKey(0)
    params = init_params(key, z_dim)

    # Small case from the module spec: batch=2 (single 128-lane tile, padded).
    key, kx = jax.random.split(key)
    proprio_small = jax.random.normal(kx, (2, 8), jnp.float32)
    out_small = jax.block_until_ready(proprio_encoder(proprio_small, params, alpha))
    ref_small = reference_forward(proprio_small, params, alpha)
    assert out_small.shape == (2, 2 * z_dim), out_small.shape
    _assert_close(out_small, ref_small, tag="small batch")

    # Multi-tile case: exercises balanced batch tiles, resident weights, the
    # non-divisible-batch path (B = 2055 -> two 1152-row tiles, not 3072).
    key, kx = jax.random.split(key)
    proprio_big = jax.random.normal(kx, (2055, 8), jnp.float32)
    out_big = jax.block_until_ready(proprio_encoder(proprio_big, params, alpha))
    ref_big = reference_forward(proprio_big, params, alpha)
    assert out_big.shape == (2055, 2 * z_dim), out_big.shape
    _assert_close(out_big, ref_big, tag="multi-tile batch")

    # Feature-major output path (no wrapper transpose) must match too.
    out_big_t = jax.block_until_ready(
        proprio_encoder(proprio_big, params, alpha, transposed_output=True))
    _assert_close(out_big_t.T, ref_big, tag="transposed output")

    print("KERNEL_OK")
</pallas_src>

<mosaic_0001>
module attributes {stable_mosaic.version = 11 : i64} {
  func.func @proprio_encoder_kernel(%arg0: i32, %arg1: memref<8x128xbf16, #tpu.memory_space<vmem>>, %arg2: memref<32x8xbf16, #tpu.memory_space<vmem>>, %arg3: memref<32x1xf32, #tpu.memory_space<vmem>>, %arg4: memref<64x32xbf16, #tpu.memory_space<vmem>>, %arg5: memref<64x1xf32, #tpu.memory_space<vmem>>, %arg6: memref<128x64xbf16, #tpu.memory_space<vmem>>, %arg7: memref<128x1xf32, #tpu.memory_space<vmem>>, %arg8: memref<64x128xbf16, #tpu.memory_space<vmem>>, %arg9: memref<64x1xf32, #tpu.memory_space<vmem>>, %arg10: memref<64x128xf32, #tpu.memory_space<vmem>>) attributes {dimension_semantics = [#tpu.dimension_semantics<parallel>], iteration_bounds = array<i64: 1>, scalar_prefetch = 0 : i64, scratch_operands = 0 : i64, tpu.core_type = #tpu.core_type<tc>, window_params = [{transform_indices = @transform_0, window_bounds = array<i64: 8, 128>}, {pipeline_mode = #tpu.pipeline_mode<synchronous>, transform_indices = @transform_1, window_bounds = array<i64: 32, 8>}, {pipeline_mode = #tpu.pipeline_mode<synchronous>, transform_indices = @transform_2, window_bounds = array<i64: 32, 1>}, {pipeline_mode = #tpu.pipeline_mode<synchronous>, transform_indices = @transform_3, window_bounds = array<i64: 64, 32>}, {pipeline_mode = #tpu.pipeline_mode<synchronous>, transform_indices = @transform_4, window_bounds = array<i64: 64, 1>}, {pipeline_mode = #tpu.pipeline_mode<synchronous>, transform_indices = @transform_5, window_bounds = array<i64: 128, 64>}, {pipeline_mode = #tpu.pipeline_mode<synchronous>, transform_indices = @transform_6, window_bounds = array<i64: 128, 1>}, {pipeline_mode = #tpu.pipeline_mode<synchronous>, transform_indices = @transform_7, window_bounds = array<i64: 64, 128>}, {pipeline_mode = #tpu.pipeline_mode<synchronous>, transform_indices = @transform_8, window_bounds = array<i64: 64, 1>}, {transform_indices = @transform_9, window_bounds = array<i64: 64, 128>}]} {
    %c0 = arith.constant 0 : index
    %c0_0 = arith.constant 0 : index
    %0 = vector.load %arg1[%c0, %c0_0] : memref<8x128xbf16, #tpu.memory_space<vmem>>, vector<8x128xbf16>
    %c0_1 = arith.constant 0 : index
    %c0_2 = arith.constant 0 : index
    %1 = vector.load %arg2[%c0_1, %c0_2] : memref<32x8xbf16, #tpu.memory_space<vmem>>, vector<32x8xbf16>
    %cst = arith.constant dense<0.000000e+00> : vector<32x128xf32>
    %2 = tpu.matmul %1, %0, %cst {dimension_numbers = #tpu.dot_dimension_numbers<[1], [0], [0], [1], [0, 0, 1, 1], [], []>} : vector<32x8xbf16>, vector<8x128xbf16>, vector<32x128xf32> -> vector<32x128xf32>
    %c0_3 = arith.constant 0 : index
    %c0_4 = arith.constant 0 : index
    %3 = vector.load %arg3[%c0_3, %c0_4] : memref<32x1xf32, #tpu.memory_space<vmem>>, vector<32x1xf32>
    %4 = vector.broadcast %3 : vector<32x1xf32> to vector<32x128xf32>
    %5 = arith.addf %2, %4 : vector<32x128xf32>
    %cst_5 = arith.constant 1.000000e-01 : f32
    %6 = vector.broadcast %cst_5 : f32 to vector<32x128xf32>
    %7 = arith.mulf %6, %5 : vector<32x128xf32>
    %8 = arith.maximumf %5, %7 : vector<32x128xf32>
    %c0_6 = arith.constant 0 : index
    %c0_7 = arith.constant 0 : index
    %9 = vector.load %arg4[%c0_6, %c0_7] : memref<64x32xbf16, #tpu.memory_space<vmem>>, vector<64x32xbf16>
    %10 = arith.truncf %8 : vector<32x128xf32> to vector<32x128xbf16>
    %cst_8 = arith.constant dense<0.000000e+00> : vector<64x128xf32>
    %11 = tpu.matmul %9, %10, %cst_8 {dimension_numbers = #tpu.dot_dimension_numbers<[1], [0], [0], [1], [0, 0, 1, 1], [], []>} : vector<64x32xbf16>, vector<32x128xbf16>, vector<64x128xf32> -> vector<64x128xf32>
    %c0_9 = arith.constant 0 : index
    %c0_10 = arith.constant 0 : index
    %12 = vector.load %arg5[%c0_9, %c0_10] : memref<64x1xf32, #tpu.memory_space<vmem>>, vector<64x1xf32>
    %13 = vector.broadcast %12 : vector<64x1xf32> to vector<64x128xf32>
    %14 = arith.addf %11, %13 : vector<64x128xf32>
    %cst_11 = arith.constant 1.000000e-01 : f32
    %15 = vector.broadcast %cst_11 : f32 to vector<64x128xf32>
    %16 = arith.mulf %15, %14 : vector<64x128xf32>
    %17 = arith.maximumf %14, %16 : vector<64x128xf32>
    %c0_12 = arith.constant 0 : index
    %c0_13 = arith.constant 0 : index
    %18 = vector.load %arg6[%c0_12, %c0_13] : memref<128x64xbf16, #tpu.memory_space<vmem>>, vector<128x64xbf16>
    %19 = arith.truncf %17 : vector<64x128xf32> to vector<64x128xbf16>
    %cst_14 = arith.constant dense<0.000000e+00> : vector<128x128xf32>
    %20 = tpu.matmul %18, %19, %cst_14 {dimension_numbers = #tpu.dot_dimension_numbers<[1], [0], [0], [1], [0, 0, 1, 1], [], []>} : vector<128x64xbf16>, vector<64x128xbf16>, vector<128x128xf32> -> vector<128x128xf32>
    %c0_15 = arith.constant 0 : index
    %c0_16 = arith.constant 0 : index
    %21 = vector.load %arg7[%c0_15, %c0_16] : memref<128x1xf32, #tpu.memory_space<vmem>>, vector<128x1xf32>
    %22 = vector.broadcast %21 : vector<128x1xf32> to vector<128x128xf32>
    %23 = arith.addf %20, %22 : vector<128x128xf32>
    %cst_17 = arith.constant 1.000000e-01 : f32
    %24 = vector.broadcast %cst_17 : f32 to vector<128x128xf32>
    %25 = arith.mulf %24, %23 : vector<128x128xf32>
    %26 = arith.maximumf %23, %25 : vector<128x128xf32>
    %c0_18 = arith.constant 0 : index
    %c0_19 = arith.constant 0 : index
    %27 = vector.load %arg8[%c0_18, %c0_19] : memref<64x128xbf16, #tpu.memory_space<vmem>>, vector<64x128xbf16>
    %28 = arith.truncf %26 : vector<128x128xf32> to vector<128x128xbf16>
    %cst_20 = arith.constant dense<0.000000e+00> : vector<64x128xf32>
    %29 = tpu.matmul %27, %28, %cst_20 {dimension_numbers = #tpu.dot_dimension_numbers<[1], [0], [0], [1], [0, 0, 1, 1], [], []>} : vector<64x128xbf16>, vector<128x128xbf16>, vector<64x128xf32> -> vector<64x128xf32>
    %c0_21 = arith.constant 0 : index
    %c0_22 = arith.constant 0 : index
    %30 = vector.load %arg9[%c0_21, %c0_22] : memref<64x1xf32, #tpu.memory_space<vmem>>, vector<64x1xf32>
    %31 = vector.broadcast %30 : vector<64x1xf32> to vector<64x128xf32>
    %32 = arith.addf %29, %31 : vector<64x128xf32>
    %cst_23 = arith.constant 1.000000e-01 : f32
    %33 = vector.broadcast %cst_23 : f32 to vector<64x128xf32>
    %34 = arith.mulf %33, %32 : vector<64x128xf32>
    %35 = arith.maximumf %32, %34 : vector<64x128xf32>
    %c0_24 = arith.constant 0 : index
    %c0_25 = arith.constant 0 : index
    %36 = vector.load %arg10[%c0_24, %c0_25] : memref<64x128xf32, #tpu.memory_space<vmem>>, vector<64x128xf32>
    tpu.vector_store %arg10[%c0_24, %c0_25], %35 {strides = array<i32>} : memref<64x128xf32, #tpu.memory_space<vmem>>, vector<64x128xf32>,
    return
  }
  func.func @transform_0(%arg0: i32) -> (i32, i32) {
    %c0_i32 = arith.constant 0 : i32
    %c0_i32_0 = arith.constant 0 : i32
    return %c0_i32, %arg0 : i32, i32
  }
  func.func @transform_1(%arg0: i32) -> (i32, i32) {
    %c0_i32 = arith.constant 0 : i32
    %c0_i32_0 = arith.constant 0 : i32
    %c0_i32_1 = arith.constant 0 : i32
    return %c0_i32, %c0_i32_0 : i32, i32
  }
  func.func @transform_2(%arg0: i32) -> (i32, i32) {
    %c0_i32 = arith.constant 0 : i32
    %c0_i32_0 = arith.constant 0 : i32
    %c0_i32_1 = arith.constant 0 : i32
    return %c0_i32, %c0_i32_0 : i32, i32
  }
  func.func @transform_3(%arg0: i32) -> (i32, i32) {
    %c0_i32 = arith.constant 0 : i32
    %c0_i32_0 = arith.constant 0 : i32
    %c0_i32_1 = arith.constant 0 : i32
    return %c0_i32, %c0_i32_0 : i32, i32
  }
  func.func @transform_4(%arg0: i32) -> (i32, i32) {
    %c0_i32 = arith.constant 0 : i32
    %c0_i32_0 = arith.constant 0 : i32
    %c0_i32_1 = arith.constant 0 : i32
    return %c0_i32, %c0_i32_0 : i32, i32
  }
  func.func @transform_5(%arg0: i32) -> (i32, i32) {
    %c0_i32 = arith.constant 0 : i32
    %c0_i32_0 = arith.constant 0 : i32
    %c0_i32_1 = arith.constant 0 : i32
    return %c0_i32, %c0_i32_0 : i32, i32
  }
  func.func @transform_6(%arg0: i32) -> (i32, i32) {
    %c0_i32 = arith.constant 0 : i32
    %c0_i32_0 = arith.constant 0 : i32
    %c0_i32_1 = arith.constant 0 : i32
    return %c0_i32, %c0_i32_0 : i32, i32
  }
  func.func @transform_7(%arg0: i32) -> (i32, i32) {
    %c0_i32 = arith.constant 0 : i32
    %c0_i32_0 = arith.constant 0 : i32
    %c0_i32_1 = arith.constant 0 : i32
    return %c0_i32, %c0_i32_0 : i32, i32
  }
  func.func @transform_8(%arg0: i32) -> (i32, i32) {
    %c0_i32 = arith.constant 0 : i32
    %c0_i32_0 = arith.constant 0 : i32
    %c0_i32_1 = arith.constant 0 : i32
    return %c0_i32, %c0_i32_0 : i32, i32
  }
  func.func @transform_9(%arg0: i32) -> (i32, i32) {
    %c0_i32 = arith.constant 0 : i32
    %c0_i32_0 = arith.constant 0 : i32
    return %c0_i32, %arg0 : i32, i32
  }
}

</mosaic_0001>

<llo_original>
// kernel: tpu_custom_call.1
$region0: #{tpu_custom_call.1}
  #allocation0 [shape = 'u32[]', space=smem, size = 0x4, offset = 0x4, fixed_abs, tag = 'smem constant byte address 0x4 - core index']
  #allocation1 [shape = 'u32[72,128]{1,0:T(1,128)}', space=vmem, size = 0x9000, scoped, tag = 'internal scratch']
  %s0 = inlined_call_operand.vmem [shape: bf16[8,128], index: 0, kind: input, shape index: {}]
  %s1 = inlined_call_operand.vmem [shape: bf16[32,8], index: 1, kind: input, shape index: {}]
  %s2 = inlined_call_operand.vmem [shape: f32[32,1], index: 2, kind: input, shape index: {}]
  %s3 = inlined_call_operand.vmem [shape: bf16[64,32], index: 3, kind: input, shape index: {}]
  %s4 = inlined_call_operand.vmem [shape: f32[64,1], index: 4, kind: input, shape index: {}]
  %s5 = inlined_call_operand.vmem [shape: bf16[128,64], index: 5, kind: input, shape index: {}]
  %s6 = inlined_call_operand.vmem [shape: f32[128,1], index: 6, kind: input, shape index: {}]
  %s7 = inlined_call_operand.vmem [shape: bf16[64,128], index: 7, kind: input, shape index: {}]
  %s8 = inlined_call_operand.vmem [shape: f32[64,1], index: 8, kind: input, shape index: {}]
  %s9 = inlined_call_operand.hbm [shape: f32[64,128], index: 9, kind: output, shape index: {}]
  %s10 = sld [smem:[#allocation0]]
  $region46: #{tpu_custom_call.1} parent=0
    _
  %s12 = ssub.s32 1, %s10
  %s13 = scalar_select 0, %s12, %s10
  $region1: #{tpu_custom_call.1} parent=0
    #allocation2 [shape = 'u8[32768]{0}', space=vmem, size = 0x8000, scoped, tag = 'output window, operand 0, single buffered']
    #allocation3 [shape = 's32[1]{0}', space=sflag, size = 0x4, scoped, tag = 'scoped memory for tpu_custom_call.1']
    %14 = vsyncpa [#allocation3], 0
    // Predicated region
    $region2: #{tpu_custom_call.1} parent=1 // pred_check
      _
    $region3: #{tpu_custom_call.1} parent=1 // pred_check_branch
      %16 = sbr.rel (0) target = $region5
    $region4: #{tpu_custom_call.1} parent=1 // pred_region
      _
    $region5: #{tpu_custom_call.1} parent=1 // pred_fallthru
      _
    // Predicated region
    $region6: #{tpu_custom_call.1} parent=1 // pred_check
      _
    $region7: #{tpu_custom_call.1} parent=1 // pred_check_branch
      %18 = sbr.rel (0) target = $region9
    $region8: #{tpu_custom_call.1} parent=1 // pred_region
      _
    $region9: #{tpu_custom_call.1} parent=1 // pred_fallthru
      _
    // Predicated region
    $region10: #{tpu_custom_call.1} parent=1 // pred_check
      _
    $region11: #{tpu_custom_call.1} parent=1 // pred_check_branch
      %20 = sbr.rel (0) target = $region13
    $region12: #{tpu_custom_call.1} parent=1 // pred_region
      _
    $region13: #{tpu_custom_call.1} parent=1 // pred_fallthru
      _
    // Predicated region
    $region14: #{tpu_custom_call.1} parent=1 // pred_check
      _
    $region15: #{tpu_custom_call.1} parent=1 // pred_check_branch
      %22 = sbr.rel (0) target = $region17
    $region16: #{tpu_custom_call.1} parent=1 // pred_region
      _
    $region17: #{tpu_custom_call.1} parent=1 // pred_fallthru
      _
    // Predicated region
    $region18: #{tpu_custom_call.1} parent=1 // pred_check
      _
    $region19: #{tpu_custom_call.1} parent=1 // pred_check_branch
      %24 = sbr.rel (0) target = $region21
    $region20: #{tpu_custom_call.1} parent=1 // pred_region
      _
    $region21: #{tpu_custom_call.1} parent=1 // pred_fallthru
      _
    // Predicated region
    $region22: #{tpu_custom_call.1} parent=1 // pred_check
      _
    $region23: #{tpu_custom_call.1} parent=1 // pred_check_branch
      %26 = sbr.rel (0) target = $region25
    $region24: #{tpu_custom_call.1} parent=1 // pred_region
      _
    $region25: #{tpu_custom_call.1} parent=1 // pred_fallthru
      _
    // Predicated region
    $region26: #{tpu_custom_call.1} parent=1 // pred_check
      _
    $region27: #{tpu_custom_call.1} parent=1 // pred_check_branch
      %28 = sbr.rel (0) target = $region29
    $region28: #{tpu_custom_call.1} parent=1 // pred_region
      _
    $region29: #{tpu_custom_call.1} parent=1 // pred_fallthru
      _
    // Predicated region
    $region30: #{tpu_custom_call.1} parent=1 // pred_check
      _
    $region31: #{tpu_custom_call.1} parent=1 // pred_check_branch
      %30 = sbr.rel (0) target = $region33
    $region32: #{tpu_custom_call.1} parent=1 // pred_region
      _
    $region33: #{tpu_custom_call.1} parent=1 // pred_fallthru
      _
    // Predicated region
    $region34: #{tpu_custom_call.1} parent=1 // pred_check
      _
    $region35: #{tpu_custom_call.1} parent=1 // pred_check_branch
      %32 = sbr.rel (0) target = $region37
    $region36: #{tpu_custom_call.1} parent=1 // pred_region
      _
    $region37: #{tpu_custom_call.1} parent=1 // pred_fallthru
      _
    %v34 = vld [vmem:[%s0] sm:$0xf]
    %v35 = vld [vmem:[%s1] sm:$0xf]
    %v36 = vld [vmem:[%s1 + $0x4] sm:$0xf]
    %v37 = vld [vmem:[%s1 + $0x8] sm:$0xf]
    %v38 = vld [vmem:[%s1 + $0xc] sm:$0xf]
    %v39 = vld [vmem:[%s2] sm:$0xff]
    %v40 = vld [vmem:[%s2 + $0x8] sm:$0xff]
    %v41 = vld [vmem:[%s2 + $0x10] sm:$0xff]
    %v42 = vld [vmem:[%s2 + $0x18] sm:$0xff]
    %44 = vset.pattern.permute.xlu0 0
    %45 = vperm.xlu0 %44, %v39
    %v46 = vpop.permute.xlu0 %45
    %49 = vset.pattern.permute.xlu0 0
    %50 = vperm.xlu0 %49, %v40
    %v51 = vpop.permute.xlu0 %50
    %54 = vset.pattern.permute.xlu0 0
    %55 = vperm.xlu0 %54, %v41
    %v56 = vpop.permute.xlu0 %55
    %59 = vset.pattern.permute.xlu0 0
    %60 = vperm.xlu0 %59, %v42
    %v61 = vpop.permute.xlu0 %60
    %v67 = vunpack.c.l.b16 %v35
    %v68 = vunpack.c.l.b16 %v36
    %v69 = vunpack.c.l.b16 %v37
    %v70 = vunpack.c.l.b16 %v38
    %v71 = vpack.c.b16 %v68, %v67
    %v72 = vpack.c.b16 %v70, %v69
    %vm73 = vcmask 64512
    %v75 = vsel %vm73, %v71, 0
    %v78 = vsel %vm73, %v72, 0
    %vm80 = vcmask 1043456
    %v82 = vsel %vm80, %v34, 0
    %84 = vmatpush.bf16.msra.mxu0 0
    %85 = vmatpush.bf16.msra.mxu0 0
    %86 = vmatpush.bf16.msra.mxu0 0
    %87 = vmatpush.bf16.msra.mxu0 0
    %88 = vmatpush.bf16.msra.mxu0 0
    %89 = vmatpush.bf16.msra.mxu0 0
    %90 = vmatpush.bf16.msra.mxu0 0
    %91 = vmatpush.bf16.msra.mxu0 %v82
    %92 = vmatmul.bf16.gmra.mxu0 %v75
    %v93 = vpop.f32.mrf.mxu0
    %v94 = vadd.f32 %v46, %v93
    %v95 = vpop.f32.mrf.mxu0
    %v96 = vadd.f32 %v51, %v95
    %97 = vmatmul.bf16.gmra.mxu0 %v78
    %v98 = vpop.f32.mrf.mxu0
    %v99 = vadd.f32 %v56, %v98
    %v100 = vpop.f32.mrf.mxu0
    %v101 = vadd.f32 %v61, %v100
    %102 = vdwg.mxu0
    %v103 = vmul.f32 %v94, 0.1
    %v104 = vmul.f32 %v96, 0.1
    %v105 = vmul.f32 %v99, 0.1
    %v106 = vmul.f32 %v101, 0.1
    %v107 = vmax.f32 %v94, %v103
    %v108 = vmax.f32 %v96, %v104
    %v109 = vmax.f32 %v99, %v105
    %v110 = vmax.f32 %v101, %v106
    %v111 = vld [vmem:[%s3] sm:$0xf]
    %v112 = vld [vmem:[%s3 + $0x4] sm:$0xf]
    %v113 = vld [vmem:[%s3 + $0x8] sm:$0xf]
    %v114 = vld [vmem:[%s3 + $0xc] sm:$0xf]
    %v115 = vld [vmem:[%s3 + $0x10] sm:$0xf]
    %v116 = vld [vmem:[%s3 + $0x14] sm:$0xf]
    %v117 = vld [vmem:[%s3 + $0x18] sm:$0xf]
    %v118 = vld [vmem:[%s3 + $0x1c] sm:$0xf]
    %v119 = vpack.c.bf16 %v108, %v107
    %v120 = vpack.c.bf16 %v110, %v109
    %v121 = vld [vmem:[%s4] sm:$0xff]
    %v122 = vld [vmem:[%s4 + $0x8] sm:$0xff]
    %v123 = vld [vmem:[%s4 + $0x10] sm:$0xff]
    %v124 = vld [vmem:[%s4 + $0x18] sm:$0xff]
    %v125 = vld [vmem:[%s4 + $0x20] sm:$0xff]
    %v126 = vld [vmem:[%s4 + $0x28] sm:$0xff]
    %v127 = vld [vmem:[%s4 + $0x30] sm:$0xff]
    %v128 = vld [vmem:[%s4 + $0x38] sm:$0xff]
    %130 = vset.pattern.permute.xlu0 0
    %131 = vperm.xlu0 %130, %v121
    %v132 = vpop.permute.xlu0 %131
    %135 = vset.pattern.permute.xlu0 0
    %136 = vperm.xlu0 %135, %v122
    %v137 = vpop.permute.xlu0 %136
    %140 = vset.pattern.permute.xlu0 0
    %141 = vperm.xlu0 %140, %v123
    %v142 = vpop.permute.xlu0 %141
    %145 = vset.pattern.permute.xlu0 0
    %146 = vperm.xlu0 %145, %v124
    %v147 = vpop.permute.xlu0 %146
    %150 = vset.pattern.permute.xlu0 0
    %151 = vperm.xlu0 %150, %v125
    %v152 = vpop.permute.xlu0 %151
    %155 = vset.pattern.permute.xlu0 0
    %156 = vperm.xlu0 %155, %v126
    %v157 = vpop.permute.xlu0 %156
    %160 = vset.pattern.permute.xlu0 0
    %161 = vperm.xlu0 %160, %v127
    %v162 = vpop.permute.xlu0 %161
    %165 = vset.pattern.permute.xlu0 0
    %166 = vperm.xlu0 %165, %v128
    %v167 = vpop.permute.xlu0 %166
    %v177 = vunpack.c.l.b16 %v111
    %v178 = vunpack.c.l.b16 %v112
    %v179 = vunpack.c.l.b16 %v113
    %v180 = vunpack.c.l.b16 %v114
    %v181 = vunpack.c.l.b16 %v115
    %v182 = vunpack.c.l.b16 %v116
    %v183 = vunpack.c.l.b16 %v117
    %v184 = vunpack.c.l.b16 %v118
    %v185 = vpack.c.b16 %v178, %v177
    %v186 = vpack.c.b16 %v180, %v179
    %v187 = vpack.c.b16 %v182, %v181
    %v188 = vpack.c.b16 %v184, %v183
    %vm189 = vcmask 261120
    %v191 = vsel %vm189, %v185, 0
    %v194 = vsel %vm189, %v186, 0
    %v197 = vsel %vm189, %v187, 0
    %v200 = vsel %vm189, %v188, 0
    %202 = vmatpush.bf16.msra.mxu0 0
    %203 = vmatpush.bf16.msra.mxu0 0
    %204 = vmatpush.bf16.msra.mxu0 0
    %205 = vmatpush.bf16.msra.mxu0 0
    %206 = vmatpush.bf16.msra.mxu0 0
    %207 = vmatpush.bf16.msra.mxu0 0
    %208 = vmatpush.bf16.msra.mxu0 %v120
    %209 = vmatpush.bf16.msra.mxu0 %v119
    %210 = vmatmul.bf16.gmra.mxu0 %v191
    %v211 = vpop.f32.mrf.mxu0
    %v212 = vadd.f32 %v132, %v211
    %v213 = vpop.f32.mrf.mxu0
    %v214 = vadd.f32 %v137, %v213
    %215 = vmatmul.bf16.gmra.mxu0 %v194
    %v216 = vpop.f32.mrf.mxu0
    %v217 = vadd.f32 %v142, %v216
    %v218 = vpop.f32.mrf.mxu0
    %v219 = vadd.f32 %v147, %v218
    %220 = vmatmul.bf16.gmra.mxu0 %v197
    %v221 = vpop.f32.mrf.mxu0
    %v222 = vadd.f32 %v152, %v221
    %v223 = vpop.f32.mrf.mxu0
    %v224 = vadd.f32 %v157, %v223
    %225 = vmatmul.bf16.gmra.mxu0 %v200
    %v226 = vpop.f32.mrf.mxu0
    %v227 = vadd.f32 %v162, %v226
    %v228 = vpop.f32.mrf.mxu0
    %v229 = vadd.f32 %v167, %v228
    %230 = vdwg.mxu0
    %v231 = vmul.f32 %v212, 0.1
    %v232 = vmul.f32 %v214, 0.1
    %v233 = vmul.f32 %v217, 0.1
    %v234 = vmul.f32 %v219, 0.1
    %v235 = vmul.f32 %v222, 0.1
    %v236 = vmul.f32 %v224, 0.1
    %v237 = vmul.f32 %v227, 0.1
    %v238 = vmul.f32 %v229, 0.1
    %v239 = vmax.f32 %v212, %v231
    %v240 = vmax.f32 %v214, %v232
    %v241 = vmax.f32 %v217, %v233
    %v242 = vmax.f32 %v219, %v234
    %v243 = vmax.f32 %v222, %v235
    %v244 = vmax.f32 %v224, %v236
    %v245 = vmax.f32 %v227, %v237
    %v246 = vmax.f32 %v229, %v238
    %v247 = vld [vmem:[%s5] sm:$0xf]
    %v248 = vld [vmem:[%s5 + $0x4] sm:$0xf]
    %v249 = vld [vmem:[%s5 + $0x8] sm:$0xf]
    %v250 = vld [vmem:[%s5 + $0xc] sm:$0xf]
    %v251 = vld [vmem:[%s5 + $0x10] sm:$0xf]
    %v252 = vld [vmem:[%s5 + $0x14] sm:$0xf]
    %v253 = vld [vmem:[%s5 + $0x18] sm:$0xf]
    %v254 = vld [vmem:[%s5 + $0x1c] sm:$0xf]
    %v255 = vld [vmem:[%s5 + $0x20] sm:$0xf]
    %v256 = vld [vmem:[%s5 + $0x24] sm:$0xf]
    %v257 = vld [vmem:[%s5 + $0x28] sm:$0xf]
    %v258 = vld [vmem:[%s5 + $0x2c] sm:$0xf]
    %v259 = vld [vmem:[%s5 + $0x30] sm:$0xf]
    %v260 = vld [vmem:[%s5 + $0x34] sm:$0xf]
    %v261 = vld [vmem:[%s5 + $0x38] sm:$0xf]
    %v262 = vld [vmem:[%s5 + $0x3c] sm:$0xf]
    %v263 = vpack.c.bf16 %v240, %v239
    %v264 = vpack.c.bf16 %v242, %v241
    %v265 = vpack.c.bf16 %v244, %v243
    %v266 = vpack.c.bf16 %v246, %v245
    %v267 = vld [vmem:[%s6] sm:$0xff]
    %v268 = vld [vmem:[%s6 + $0x8] sm:$0xff]
    %v269 = vld [vmem:[%s6 + $0x10] sm:$0xff]
    %v270 = vld [vmem:[%s6 + $0x18] sm:$0xff]
    %v271 = vld [vmem:[%s6 + $0x20] sm:$0xff]
    %v272 = vld [vmem:[%s6 + $0x28] sm:$0xff]
    %v273 = vld [vmem:[%s6 + $0x30] sm:$0xff]
    %v274 = vld [vmem:[%s6 + $0x38] sm:$0xff]
    %v275 = vld [vmem:[%s6 + $0x40] sm:$0xff]
    %v276 = vld [vmem:[%s6 + $0x48] sm:$0xff]
    %v277 = vld [vmem:[%s6 + $0x50] sm:$0xff]
    %v278 = vld [vmem:[%s6 + $0x58] sm:$0xff]
    %v279 = vld [vmem:[%s6 + $0x60] sm:$0xff]
    %v280 = vld [vmem:[%s6 + $0x68] sm:$0xff]
    %v281 = vld [vmem:[%s6 + $0x70] sm:$0xff]
    %v282 = vld [vmem:[%s6 + $0x78] sm:$0xff]
    %284 = vset.pattern.permute.xlu0 0
    %285 = vperm.xlu0 %284, %v267
    %v286 = vpop.permute.xlu0 %285
    %289 = vset.pattern.permute.xlu0 0
    %290 = vperm.xlu0 %289, %v268
    %v291 = vpop.permute.xlu0 %290
    %294 = vset.pattern.permute.xlu0 0
    %295 = vperm.xlu0 %294, %v269
    %v296 = vpop.permute.xlu0 %295
    %299 = vset.pattern.permute.xlu0 0
    %300 = vperm.xlu0 %299, %v270
    %v301 = vpop.permute.xlu0 %300
    %304 = vset.pattern.permute.xlu0 0
    %305 = vperm.xlu0 %304, %v271
    %v306 = vpop.permute.xlu0 %305
    %309 = vset.pattern.permute.xlu0 0
    %310 = vperm.xlu0 %309, %v272
    %v311 = vpop.permute.xlu0 %310
    %314 = vset.pattern.permute.xlu0 0
    %315 = vperm.xlu0 %314, %v273
    %v316 = vpop.permute.xlu0 %315
    %319 = vset.pattern.permute.xlu0 0
    %320 = vperm.xlu0 %319, %v274
    %v321 = vpop.permute.xlu0 %320
    %324 = vset.pattern.permute.xlu0 0
    %325 = vperm.xlu0 %324, %v275
    %v326 = vpop.permute.xlu0 %325
    %329 = vset.pattern.permute.xlu0 0
    %330 = vperm.xlu0 %329, %v276
    %v331 = vpop.permute.xlu0 %330
    %334 = vset.pattern.permute.xlu0 0
    %335 = vperm.xlu0 %334, %v277
    %v336 = vpop.permute.xlu0 %335
    %339 = vset.pattern.permute.xlu0 0
    %340 = vperm.xlu0 %339, %v278
    %v341 = vpop.permute.xlu0 %340
    %344 = vset.pattern.permute.xlu0 0
    %345 = vperm.xlu0 %344, %v279
    %v346 = vpop.permute.xlu0 %345
    %349 = vset.pattern.permute.xlu0 0
    %350 = vperm.xlu0 %349, %v280
    %v351 = vpop.permute.xlu0 %350
    %354 = vset.pattern.permute.xlu0 0
    %355 = vperm.xlu0 %354, %v281
    %v356 = vpop.permute.xlu0 %355
    %359 = vset.pattern.permute.xlu0 0
    %360 = vperm.xlu0 %359, %v282
    %v361 = vpop.permute.xlu0 %360
    %v379 = vunpack.c.l.b16 %v247
    %v380 = vunpack.c.l.b16 %v248
    %v381 = vunpack.c.l.b16 %v249
    %v382 = vunpack.c.l.b16 %v250
    %v383 = vunpack.c.l.b16 %v251
    %v384 = vunpack.c.l.b16 %v252
    %v385 = vunpack.c.l.b16 %v253
    %v386 = vunpack.c.l.b16 %v254
    %v387 = vunpack.c.l.b16 %v255
    %v388 = vunpack.c.l.b16 %v256
    %v389 = vunpack.c.l.b16 %v257
    %v390 = vunpack.c.l.b16 %v258
    %v391 = vunpack.c.l.b16 %v259
    %v392 = vunpack.c.l.b16 %v260
    %v393 = vunpack.c.l.b16 %v261
    %v394 = vunpack.c.l.b16 %v262
    %v395 = vpack.c.b16 %v380, %v379
    %v396 = vpack.c.b16 %v382, %v381
    %v397 = vpack.c.b16 %v384, %v383
    %v398 = vpack.c.b16 %v386, %v385
    %v399 = vpack.c.b16 %v388, %v387
    %v400 = vpack.c.b16 %v390, %v389
    %v401 = vpack.c.b16 %v392, %v391
    %v402 = vpack.c.b16 %v394, %v393
    %vm403 = vcmask 523264
    %v405 = vsel %vm403, %v395, 0
    %v408 = vsel %vm403, %v396, 0
    %v411 = vsel %vm403, %v397, 0
    %v414 = vsel %vm403, %v398, 0
    %v417 = vsel %vm403, %v399, 0
    %v420 = vsel %vm403, %v400, 0
    %v423 = vsel %vm403, %v401, 0
    %v426 = vsel %vm403, %v402, 0
    %428 = vmatpush.bf16.msra.mxu0 0
    %429 = vmatpush.bf16.msra.mxu0 0
    %430 = vmatpush.bf16.msra.mxu0 0
    %431 = vmatpush.bf16.msra.mxu0 0
    %432 = vmatpush.bf16.msra.mxu0 %v266
    %433 = vmatpush.bf16.msra.mxu0 %v265
    %434 = vmatpush.bf16.msra.mxu0 %v264
    %435 = vmatpush.bf16.msra.mxu0 %v263
    %436 = vmatmul.bf16.gmra.mxu0 %v405
    %v437 = vpop.f32.mrf.mxu0
    %v438 = vadd.f32 %v286, %v437
    %v439 = vpop.f32.mrf.mxu0
    %v440 = vadd.f32 %v291, %v439
    %441 = vmatmul.bf16.gmra.mxu0 %v408
    %v442 = vpop.f32.mrf.mxu0
    %v443 = vadd.f32 %v296, %v442
    %v444 = vpop.f32.mrf.mxu0
    %v445 = vadd.f32 %v301, %v444
    %446 = vmatmul.bf16.gmra.mxu0 %v411
    %v447 = vpop.f32.mrf.mxu0
    %v448 = vadd.f32 %v306, %v447
    %v449 = vpop.f32.mrf.mxu0
    %v450 = vadd.f32 %v311, %v449
    %451 = vmatmul.bf16.gmra.mxu0 %v414
    %v452 = vpop.f32.mrf.mxu0
    %v453 = vadd.f32 %v316, %v452
    %v454 = vpop.f32.mrf.mxu0
    %v455 = vadd.f32 %v321, %v454
    %456 = vmatmul.bf16.gmra.mxu0 %v417
    %v457 = vpop.f32.mrf.mxu0
    %v458 = vadd.f32 %v326, %v457
    %v459 = vpop.f32.mrf.mxu0
    %v460 = vadd.f32 %v331, %v459
    %461 = vmatmul.bf16.gmra.mxu0 %v420
    %v462 = vpop.f32.mrf.mxu0
    %v463 = vadd.f32 %v336, %v462
    %v464 = vpop.f32.mrf.mxu0
    %v465 = vadd.f32 %v341, %v464
    %466 = vmatmul.bf16.gmra.mxu0 %v423
    %v467 = vpop.f32.mrf.mxu0
    %v468 = vadd.f32 %v346, %v467
    %v469 = vpop.f32.mrf.mxu0
    %v470 = vadd.f32 %v351, %v469
    %471 = vmatmul.bf16.gmra.mxu0 %v426
    %v472 = vpop.f32.mrf.mxu0
    %v473 = vadd.f32 %v356, %v472
    %v474 = vpop.f32.mrf.mxu0
    %v475 = vadd.f32 %v361, %v474
    %476 = vdwg.mxu0
    %v477 = vmul.f32 %v438, 0.1
    %v478 = vmul.f32 %v440, 0.1
    %v479 = vmul.f32 %v443, 0.1
    %v480 = vmul.f32 %v445, 0.1
    %v481 = vmul.f32 %v448, 0.1
    %v482 = vmul.f32 %v450, 0.1
    %v483 = vmul.f32 %v453, 0.1
    %v484 = vmul.f32 %v455, 0.1
    %v485 = vmul.f32 %v458, 0.1
    %v486 = vmul.f32 %v460, 0.1
    %v487 = vmul.f32 %v463, 0.1
    %v488 = vmul.f32 %v465, 0.1
    %v489 = vmul.f32 %v468, 0.1
    %v490 = vmul.f32 %v470, 0.1
    %v491 = vmul.f32 %v473, 0.1
    %v492 = vmul.f32 %v475, 0.1
    %v493 = vmax.f32 %v438, %v477
    %v494 = vmax.f32 %v440, %v478
    %v495 = vmax.f32 %v443, %v479
    %v496 = vmax.f32 %v445, %v480
    %v497 = vmax.f32 %v448, %v481
    %v498 = vmax.f32 %v450, %v482
    %v499 = vmax.f32 %v453, %v483
    %v500 = vmax.f32 %v455, %v484
    %v501 = vmax.f32 %v458, %v485
    %v502 = vmax.f32 %v460, %v486
    %v503 = vmax.f32 %v463, %v487
    %v504 = vmax.f32 %v465, %v488
    %v505 = vmax.f32 %v468, %v489
    %v506 = vmax.f32 %v470, %v490
    %v507 = vmax.f32 %v473, %v491
    %v508 = vmax.f32 %v475, %v492
    %v509 = vld [vmem:[%s7] sm:$0xf]
    %v510 = vld [vmem:[%s7 + $0x4] sm:$0xf]
    %v511 = vld [vmem:[%s7 + $0x8] sm:$0xf]
    %v512 = vld [vmem:[%s7 + $0xc] sm:$0xf]
    %v513 = vld [vmem:[%s7 + $0x10] sm:$0xf]
    %v514 = vld [vmem:[%s7 + $0x14] sm:$0xf]
    %v515 = vld [vmem:[%s7 + $0x18] sm:$0xf]
    %v516 = vld [vmem:[%s7 + $0x1c] sm:$0xf]
    %v517 = vpack.c.bf16 %v494, %v493
    %v518 = vpack.c.bf16 %v496, %v495
    %v519 = vpack.c.bf16 %v498, %v497
    %v520 = vpack.c.bf16 %v500, %v499
    %v521 = vpack.c.bf16 %v502, %v501
    %v522 = vpack.c.bf16 %v504, %v503
    %v523 = vpack.c.bf16 %v506, %v505
    %v524 = vpack.c.bf16 %v508, %v507
    %v525 = vld [vmem:[%s8] sm:$0xff]
    %v526 = vld [vmem:[%s8 + $0x8] sm:$0xff]
    %v527 = vld [vmem:[%s8 + $0x10] sm:$0xff]
    %v528 = vld [vmem:[%s8 + $0x18] sm:$0xff]
    %v529 = vld [vmem:[%s8 + $0x20] sm:$0xff]
    %v530 = vld [vmem:[%s8 + $0x28] sm:$0xff]
    %v531 = vld [vmem:[%s8 + $0x30] sm:$0xff]
    %v532 = vld [vmem:[%s8 + $0x38] sm:$0xff]
    %534 = vset.pattern.permute.xlu0 0
    %535 = vperm.xlu0 %534, %v525
    %v536 = vpop.permute.xlu0 %535
    %539 = vset.pattern.permute.xlu0 0
    %540 = vperm.xlu0 %539, %v526
    %v541 = vpop.permute.xlu0 %540
    %544 = vset.pattern.permute.xlu0 0
    %545 = vperm.xlu0 %544, %v527
    %v546 = vpop.permute.xlu0 %545
    %549 = vset.pattern.permute.xlu0 0
    %550 = vperm.xlu0 %549, %v528
    %v551 = vpop.permute.xlu0 %550
    %554 = vset.pattern.permute.xlu0 0
    %555 = vperm.xlu0 %554, %v529
    %v556 = vpop.permute.xlu0 %555
    %559 = vset.pattern.permute.xlu0 0
    %560 = vperm.xlu0 %559, %v530
    %v561 = vpop.permute.xlu0 %560
    %564 = vset.pattern.permute.xlu0 0
    %565 = vperm.xlu0 %564, %v531
    %v566 = vpop.permute.xlu0 %565
    %569 = vset.pattern.permute.xlu0 0
    %570 = vperm.xlu0 %569, %v532
    %v571 = vpop.permute.xlu0 %570
    %v581 = vunpack.c.l.b16 %v509
    %v582 = vunpack.c.l.b16 %v510
    %v583 = vunpack.c.l.b16 %v511
    %v584 = vunpack.c.l.b16 %v512
    %v585 = vunpack.c.l.b16 %v513
    %v586 = vunpack.c.l.b16 %v514
    %v587 = vunpack.c.l.b16 %v515
    %v588 = vunpack.c.l.b16 %v516
    %v589 = vpack.c.b16 %v582, %v581
    %v590 = vpack.c.b16 %v584, %v583
    %v591 = vpack.c.b16 %v586, %v585
    %v592 = vpack.c.b16 %v588, %v587
    %597 = vmatpush.bf16.msra.mxu0 %v524
    %598 = vmatpush.bf16.msra.mxu0 %v523
    %599 = vmatpush.bf16.msra.mxu0 %v522
    %600 = vmatpush.bf16.msra.mxu0 %v521
    %601 = vmatpush.bf16.msra.mxu0 %v520
    %602 = vmatpush.bf16.msra.mxu0 %v519
    %603 = vmatpush.bf16.msra.mxu0 %v518
    %604 = vmatpush.bf16.msra.mxu0 %v517
    %605 = vmatmul.bf16.gmra.mxu0 %v589
    %v606 = vpop.f32.mrf.mxu0
    %v607 = vadd.f32 %v536, %v606
    %v608 = vpop.f32.mrf.mxu0
    %v609 = vadd.f32 %v541, %v608
    %610 = vmatmul.bf16.gmra.mxu0 %v590
    %v611 = vpop.f32.mrf.mxu0
    %v612 = vadd.f32 %v546, %v611
    %v613 = vpop.f32.mrf.mxu0
    %v614 = vadd.f32 %v551, %v613
    %615 = vmatmul.bf16.gmra.mxu0 %v591
    %v616 = vpop.f32.mrf.mxu0
    %v617 = vadd.f32 %v556, %v616
    %v618 = vpop.f32.mrf.mxu0
    %v619 = vadd.f32 %v561, %v618
    %620 = vmatmul.bf16.gmra.mxu0 %v592
    %v621 = vpop.f32.mrf.mxu0
    %v622 = vadd.f32 %v566, %v621
    %v623 = vpop.f32.mrf.mxu0
    %v624 = vadd.f32 %v571, %v623
    %625 = vdwg.mxu0
    %v626 = vmul.f32 %v607, 0.1
    %v627 = vmul.f32 %v609, 0.1
    %v628 = vmul.f32 %v612, 0.1
    %v629 = vmul.f32 %v614, 0.1
    %v630 = vmul.f32 %v617, 0.1
    %v631 = vmul.f32 %v619, 0.1
    %v632 = vmul.f32 %v622, 0.1
    %v633 = vmul.f32 %v624, 0.1
    %v634 = vmax.f32 %v607, %v626
    %v635 = vmax.f32 %v609, %v627
    %v636 = vmax.f32 %v612, %v628
    %v637 = vmax.f32 %v614, %v629
    %v638 = vmax.f32 %v617, %v630
    %v639 = vmax.f32 %v619, %v631
    %v640 = vmax.f32 %v622, %v632
    %v641 = vmax.f32 %v624, %v633
    %642 = vst [vmem:[#allocation2] sm:$0xff] %v634
    %643 = vst [vmem:[#allocation2 + $0x8] sm:$0xff] %v635
    %644 = vst [vmem:[#allocation2 + $0x10] sm:$0xff] %v636
    %645 = vst [vmem:[#allocation2 + $0x18] sm:$0xff] %v637
    %646 = vst [vmem:[#allocation2 + $0x20] sm:$0xff] %v638
    %647 = vst [vmem:[#allocation2 + $0x28] sm:$0xff] %v639
    %648 = vst [vmem:[#allocation2 + $0x30] sm:$0xff] %v640
    %649 = vst [vmem:[#allocation2 + $0x38] sm:$0xff] %v641
    // Predicated region
    $region38: #{tpu_custom_call.1} parent=1 // pred_check
      _
    $region39: #{tpu_custom_call.1} parent=1 // pred_check_branch
      %651 = sbr.rel (0) target = $region41
    $region40: #{tpu_custom_call.1} parent=1 // pred_region
      %653 = vsyncadd [#allocation3], 0
      %s654 = sshll.u32 [#allocation2], 4
      %s655 = int_to_ptr.vmem [resolvable:$true] %s654
      %s656 = sshll.u32 %s9, 4
      %s657 = int_to_ptr.hbm [resolvable:$true] %s656
      %662 = dma.vmem_to_hbm [thread:$0]  %s655, 1024, %s657, [#allocation3], 128, 128, 8
    $region41: #{tpu_custom_call.1} parent=1 // pred_fallthru
      _
    // Predicated region
    $region42: #{tpu_custom_call.1} parent=1 // pred_check
      _
    $region43: #{tpu_custom_call.1} parent=1 // pred_check_branch
      %664 = sbr.rel (0) target = $region45
    $region44: #{tpu_custom_call.1} parent=1 // pred_region
      %666 = dma.done [#allocation3], 1024
    $region45: #{tpu_custom_call.1} parent=1 // pred_fallthru
      _
    %667 = vsyncpa [#allocation3], 1

</llo_original>
